<compile_context>
chip_gen: v6e
topology: v6e:2x2x1
jax: 0.10.0
libtpu: 0.0.40
codegen_flags: <defaults>
</compile_context>

<pallas_src>
import jax
import jax.numpy as jnp
from jax.experimental import pallas as pl
from jax.experimental.pallas import tpu as pltpu

LANES = 128


def _cdiv(a, b):
    return (a + b - 1) // b


def _round_up(x, m):
    return _cdiv(x, m) * m


def _sublane_multiple(dtype):
    # f32 -> 8, bf16/f16 -> 16, int8/fp8 -> 32 (sub-32-bit packs along sublanes).
    itemsize = jnp.dtype(dtype).itemsize
    return max(8, 8 * (4 // max(itemsize, 1)))


def _device_kind():
    try:
        return jax.devices()[0].device_kind.lower()
    except Exception:
        return ""


def _make_kernel(tile_rows, inner_rows, rows, blocks_per_split, needs_mask):
    """Accumulates per-lane partial sums of o*g, o*o, g*g into acc_ref."""
    n_inner = tile_rows // inner_rows
    groups = inner_rows // 8
    unroll = max(1, min(8, n_inner))

    def kernel(o_ref, g_ref, acc_ref):
        j = pl.program_id(1)

        @pl.when(j == 0)
        def _():
            acc_ref[...] = jnp.zeros_like(acc_ref)

        def make_body(limit):
            masked = limit is not None

            def body(k, carry):
                og, oo, gg = carry
                r = pl.multiple_of(k * inner_rows, inner_rows)
                o = o_ref[pl.ds(r, inner_rows), :].astype(jnp.float32)
                g = g_ref[pl.ds(r, inner_rows), :].astype(jnp.float32)
                if masked:
                    # Tile-local row index vs. number of valid rows in this tile.
                    row = jax.lax.broadcasted_iota(
                        jnp.int32, (inner_rows, LANES), 0) + r
                    valid = row < limit
                    o = jnp.where(valid, o, 0.0)
                    g = jnp.where(valid, g, 0.0)
                o3 = o.reshape(groups, 8, LANES)
                g3 = g.reshape(groups, 8, LANES)
                return (og + jnp.sum(o3 * g3, axis=0),
                        oo + jnp.sum(o3 * o3, axis=0),
                        gg + jnp.sum(g3 * g3, axis=0))

            return body

        def run(body):
            zero = jnp.zeros((8, LANES), jnp.float32)
            og, oo, gg = jax.lax.fori_loop(
                0, n_inner, body, (zero, zero, zero), unroll=unroll)
            acc_ref[0, 0] += og   # sum(output * grounds) partials
            acc_ref[0, 1] += oo   # sum(output ** 2)      partials
            acc_ref[0, 2] += gg   # sum(grounds ** 2)     partials

        if needs_mask:
            s = pl.program_id(0)
            start_row = (s * blocks_per_split + j) * tile_rows
            limit = rows - start_row   # valid rows in this tile (may be <= 0)

            @pl.when(limit >= tile_rows)      # interior full block: no mask cost
            def _():
                run(make_body(None))

            @pl.when(limit < tile_rows)       # ragged / clamped-duplicate block
            def _():
                run(make_body(limit))
        else:
            run(make_body(None))

    return kernel


def tanimoto_loss(output, grounds, *, max_tile_rows=None, num_splits=None):
    """Pallas implementation of the PyTorch tanimoto_loss.forward."""
    assert output.shape == grounds.shape
    eps = jnp.float32(1e-07)

    o_flat = output.reshape(-1)
    g_flat = grounds.reshape(-1)
    n = o_flat.shape[0]

    sub = max(_sublane_multiple(o_flat.dtype), _sublane_multiple(g_flat.dtype))
    itemsize = max(jnp.dtype(o_flat.dtype).itemsize,
                   jnp.dtype(g_flat.dtype).itemsize)

    # Kernel consumes the largest prefix that is a whole number of (sub, 128)
    # native-layout tiles; the (< sub*128 element) tail is reduced with plain
    # jnp below.  No padding, no extra HBM copies, no wrapper-side casts.
    unit = sub * LANES
    n_main = (n // unit) * unit
    sums = jnp.zeros((3,), jnp.float32)

    if n_main > 0:
        rows = n_main // LANES                       # multiple of `sub`
        o2d = o_flat[:n_main].reshape(rows, LANES)
        g2d = g_flat[:n_main].reshape(rows, LANES)

        kind = _device_kind()
        is_v7x = ("v7" in kind) or ("7x" in kind)
        is_v5 = "v5" in kind

        if max_tile_rows is None:
            base_rows = 4096 if is_v5 else 8192      # 2 MiB / 4 MiB f32 per block
            max_tile_rows = base_rows * max(1, 4 // itemsize)
        max_tile_rows = max(sub, _round_up(max_tile_rows, sub))

        # Balanced tiling: (nearly) equal-size blocks, each <= max_tile_rows and
        # <= rows, so no block ever extends past the array and the ragged last
        # block wastes at most (sub - 1) rows of HBM traffic.
        blocks = _cdiv(rows, max_tile_rows)
        tile_rows = _round_up(_cdiv(rows, blocks), sub)
        blocks = _cdiv(rows, tile_rows)

        if num_splits is None:
            num_splits = 2 if (is_v7x and blocks >= 2) else 1  # dual TC only v7x
        num_splits = max(1, min(num_splits, blocks))
        bps = _cdiv(blocks, num_splits)              # blocks per split
        needs_mask = (rows % tile_rows != 0) or (blocks % num_splits != 0)

        if blocks % num_splits == 0:
            def in_map(s, j):
                return (s * bps + j, 0)
        else:
            def in_map(s, j):
                # Clamp so the DMA never targets a nonexistent block; the
                # in-kernel mask zeroes the clamped re-read's contribution.
                return (jnp.minimum(s * bps + j, blocks - 1), 0)

        kernel = _make_kernel(tile_rows, sub, rows, bps, needs_mask)

        cost = pl.CostEstimate(
            flops=6 * rows * LANES,                  # 3 mul + 3 add per element
            transcendentals=0,
            bytes_accessed=rows * LANES * (jnp.dtype(o2d.dtype).itemsize
                                           + jnp.dtype(g2d.dtype).itemsize)
                           + num_splits * 3 * 8 * LANES * 4,
        )

        partials = pl.pallas_call(
            kernel,
            out_shape=jax.ShapeDtypeStruct((num_splits, 3, 8, LANES), jnp.float32),
            grid_spec=pltpu.PrefetchScalarGridSpec(
                num_scalar_prefetch=0,
                grid=(num_splits, bps),
                in_specs=[
                    pl.BlockSpec((tile_rows, LANES), in_map),
                    pl.BlockSpec((tile_rows, LANES), in_map),
                ],
                out_specs=pl.BlockSpec((1, 3, 8, LANES),
                                       lambda s, j: (s, 0, 0, 0)),
            ),
            compiler_params=pltpu.CompilerParams(
                dimension_semantics=("parallel", "arbitrary"),
            ),
            cost_estimate=cost,
        )(o2d, g2d)

        # Tiny follow-up reduce (num_splits * 3 * 8 * 128 floats).
        sums = jnp.sum(partials, axis=(0, 2, 3))

    if n_main != n:
        # Unaligned tail (< sub * 128 elements): plain jnp, negligible cost,
        # avoids any jnp.pad HBM copy of the full inputs.
        o_t = o_flat[n_main:].astype(jnp.float32)
        g_t = g_flat[n_main:].astype(jnp.float32)
        sums = sums + jnp.stack(
            [jnp.sum(o_t * g_t), jnp.sum(o_t * o_t), jnp.sum(g_t * g_t)])

    inter = sums[0]
    union = sums[1] + sums[2] - inter
    return 1.0 - (inter + eps) / (union + eps)


def tanimoto_loss_ref(output, grounds):
    eps = 1e-07
    inter = jnp.sum(output * grounds)
    union = jnp.sum(output**2) + jnp.sum(grounds**2) - inter
    return 1.0 - (inter + eps) / (union + eps)


if __name__ == "__main__":
    key = jax.random.PRNGKey(0)
    k1, k2, k3, k4, k5, k6, k7, k8 = jax.random.split(key, 8)

    # 1) Small NCHW case (segmentation probabilities vs. binary ground truth).
    shape = (2, 4, 16, 16)
    out1 = jax.nn.sigmoid(jax.random.normal(k1, shape, dtype=jnp.float32))
    gt1 = (jax.random.uniform(k2, shape) > 0.5).astype(jnp.float32)
    loss1 = tanimoto_loss(out1, gt1)
    jax.block_until_ready(loss1)
    ref1 = tanimoto_loss_ref(out1, gt1)
    assert jnp.allclose(loss1, ref1, atol=1e-5, rtol=1e-5), (loss1, ref1)

    # 2) Ragged element count (n % 128 != 0): exercises the copy-free jnp tail.
    shape2 = (2, 4, 21, 13)
    out2 = jax.nn.sigmoid(jax.random.normal(k3, shape2, dtype=jnp.float32))
    gt2 = (jax.random.uniform(k4, shape2) > 0.5).astype(jnp.float32)
    loss2 = tanimoto_loss(out2, gt2)
    jax.block_until_ready(loss2)
    ref2 = tanimoto_loss_ref(out2, gt2)
    assert jnp.allclose(loss2, ref2, atol=1e-5, rtol=1e-5), (loss2, ref2)

    # 3) Multi-block grid with a small forced tile: exercises the pipelined
    #    reduction axis, the 2-way split (including the clamped duplicate
    #    block), the runtime-gated ragged-block mask, and the jnp tail.
    shape3 = (2, 4, 184, 184)
    out3 = jax.nn.sigmoid(jax.random.normal(k5, shape3, dtype=jnp.float32))
    gt3 = (jax.random.uniform(k6, shape3) > 0.5).astype(jnp.float32)
    loss3 = tanimoto_loss(out3, gt3, max_tile_rows=256, num_splits=2)
    jax.block_until_ready(loss3)
    ref3 = tanimoto_loss_ref(out3, gt3)
    assert jnp.allclose(loss3, ref3, atol=1e-4, rtol=1e-4), (loss3, ref3)

    # 4) bf16 inputs: native-dtype streaming from HBM, in-kernel cast to f32.
    shape4 = (2, 4, 32, 32)
    out4 = jax.nn.sigmoid(jax.random.normal(k7, shape4)).astype(jnp.bfloat16)
    gt4 = (jax.random.uniform(k8, shape4) > 0.5).astype(jnp.bfloat16)
    loss4 = tanimoto_loss(out4, gt4)
    jax.block_until_ready(loss4)
    ref4 = tanimoto_loss_ref(out4.astype(jnp.float32), gt4.astype(jnp.float32))
    assert jnp.allclose(loss4, ref4, atol=1e-3, rtol=1e-3), (loss4, ref4)

    print("KERNEL_OK")
</pallas_src>

<mosaic_0001>
module attributes {stable_mosaic.version = 11 : i64} {
  func.func @kernel(%arg0: i32, %arg1: i32, %arg2: memref<16x128xf32, #tpu.memory_space<vmem>>, %arg3: memref<16x128xf32, #tpu.memory_space<vmem>>, %arg4: memref<1x3x8x128xf32, #tpu.memory_space<vmem>>) attributes {dimension_semantics = [#tpu.dimension_semantics<parallel>, #tpu.dimension_semantics<arbitrary>], iteration_bounds = array<i64: 1, 1>, scalar_prefetch = 0 : i64, scratch_operands = 0 : i64, tpu.core_type = #tpu.core_type<tc>, window_params = [{transform_indices = @transform_0, window_bounds = array<i64: 16, 128>}, {transform_indices = @transform_1, window_bounds = array<i64: 16, 128>}, {transform_indices = @transform_2, window_bounds = array<i64: 1, 3, 8, 128>}]} {
    %c0_i32 = arith.constant 0 : i32
    %0 = arith.cmpi eq, %arg1, %c0_i32 : i32
    %1 = arith.extui %0 : i1 to i32
    %c0_i32_0 = arith.constant 0 : i32
    %2 = arith.cmpi ne, %1, %c0_i32_0 : i32
    scf.if %2 {
      %cst_34 = arith.constant 0.000000e+00 : f32
      %56 = vector.broadcast %cst_34 : f32 to vector<1x3x8x128xf32>
      %c0_35 = arith.constant 0 : index
      %c0_36 = arith.constant 0 : index
      %c0_37 = arith.constant 0 : index
      %c0_38 = arith.constant 0 : index
      %57 = vector.load %arg4[%c0_35, %c0_36, %c0_37, %c0_38] : memref<1x3x8x128xf32, #tpu.memory_space<vmem>>, vector<1x3x8x128xf32>
      tpu.vector_store %arg4[%c0_35, %c0_36, %c0_37, %c0_38], %56 {strides = array<i32>} : memref<1x3x8x128xf32, #tpu.memory_space<vmem>>, vector<1x3x8x128xf32>,
    } else {
    }
    %cst = arith.constant 0.000000e+00 : f32
    %3 = vector.broadcast %cst : f32 to vector<8x128xf32>
    %c0_i32_1 = arith.constant 0 : i32
    %c8_i32 = arith.constant 8 : i32
    %4 = arith.muli %c0_i32_1, %c8_i32 : i32
    %5 = tpu.assume_multiple %4, 8 : i32
    %6 = arith.index_cast %5 : i32 to index
    %c0 = arith.constant 0 : index
    %7 = vector.load %arg2[%6, %c0] : memref<16x128xf32, #tpu.memory_space<vmem>>, vector<8x128xf32>
    %8 = arith.index_cast %5 : i32 to index
    %c0_2 = arith.constant 0 : index
    %9 = vector.load %arg3[%8, %c0_2] : memref<16x128xf32, #tpu.memory_space<vmem>>, vector<8x128xf32>
    %10 = vector.shape_cast %7 : vector<8x128xf32> to vector<1x8x128xf32>
    %11 = vector.shape_cast %9 : vector<8x128xf32> to vector<1x8x128xf32>
    %12 = arith.mulf %10, %11 : vector<1x8x128xf32>
    %cst_3 = arith.constant dense<0.000000e+00> : vector<8x128xf32>
    %13 = vector.multi_reduction <add>, %12, %cst_3 [0] : vector<1x8x128xf32> to vector<8x128xf32>
    %14 = arith.addf %3, %13 : vector<8x128xf32>
    %15 = arith.mulf %10, %10 : vector<1x8x128xf32>
    %cst_4 = arith.constant dense<0.000000e+00> : vector<8x128xf32>
    %16 = vector.multi_reduction <add>, %15, %cst_4 [0] : vector<1x8x128xf32> to vector<8x128xf32>
    %17 = arith.addf %3, %16 : vector<8x128xf32>
    %18 = arith.mulf %11, %11 : vector<1x8x128xf32>
    %cst_5 = arith.constant dense<0.000000e+00> : vector<8x128xf32>
    %19 = vector.multi_reduction <add>, %18, %cst_5 [0] : vector<1x8x128xf32> to vector<8x128xf32>
    %20 = arith.addf %3, %19 : vector<8x128xf32>
    %c1_i32 = arith.constant 1 : i32
    %c8_i32_6 = arith.constant 8 : i32
    %21 = arith.muli %c1_i32, %c8_i32_6 : i32
    %22 = tpu.assume_multiple %21, 8 : i32
    %23 = arith.index_cast %22 : i32 to index
    %c0_7 = arith.constant 0 : index
    %24 = vector.load %arg2[%23, %c0_7] : memref<16x128xf32, #tpu.memory_space<vmem>>, vector<8x128xf32>
    %25 = arith.index_cast %22 : i32 to index
    %c0_8 = arith.constant 0 : index
    %26 = vector.load %arg3[%25, %c0_8] : memref<16x128xf32, #tpu.memory_space<vmem>>, vector<8x128xf32>
    %27 = vector.shape_cast %24 : vector<8x128xf32> to vector<1x8x128xf32>
    %28 = vector.shape_cast %26 : vector<8x128xf32> to vector<1x8x128xf32>
    %29 = arith.mulf %27, %28 : vector<1x8x128xf32>
    %cst_9 = arith.constant dense<0.000000e+00> : vector<8x128xf32>
    %30 = vector.multi_reduction <add>, %29, %cst_9 [0] : vector<1x8x128xf32> to vector<8x128xf32>
    %31 = arith.addf %14, %30 : vector<8x128xf32>
    %32 = arith.mulf %27, %27 : vector<1x8x128xf32>
    %cst_10 = arith.constant dense<0.000000e+00> : vector<8x128xf32>
    %33 = vector.multi_reduction <add>, %32, %cst_10 [0] : vector<1x8x128xf32> to vector<8x128xf32>
    %34 = arith.addf %17, %33 : vector<8x128xf32>
    %35 = arith.mulf %28, %28 : vector<1x8x128xf32>
    %cst_11 = arith.constant dense<0.000000e+00> : vector<8x128xf32>
    %36 = vector.multi_reduction <add>, %35, %cst_11 [0] : vector<1x8x128xf32> to vector<8x128xf32>
    %37 = arith.addf %20, %36 : vector<8x128xf32>
    %c2_i32 = arith.constant 2 : i32
    %c0_12 = arith.constant 0 : index
    %c0_13 = arith.constant 0 : index
    %c0_14 = arith.constant 0 : index
    %c0_15 = arith.constant 0 : index
    %38 = vector.load %arg4[%c0_12, %c0_13, %c0_14, %c0_15] : memref<1x3x8x128xf32, #tpu.memory_space<vmem>>, vector<1x1x8x128xf32>
    %39 = vector.shape_cast %38 : vector<1x1x8x128xf32> to vector<8x128xf32>
    %40 = arith.addf %39, %31 : vector<8x128xf32>
    %c0_16 = arith.constant 0 : index
    %c0_17 = arith.constant 0 : index
    %c0_18 = arith.constant 0 : index
    %c0_19 = arith.constant 0 : index
    %41 = vector.load %arg4[%c0_16, %c0_17, %c0_18, %c0_19] : memref<1x3x8x128xf32, #tpu.memory_space<vmem>>, vector<1x1x8x128xf32>
    %42 = vector.shape_cast %41 : vector<1x1x8x128xf32> to vector<8x128xf32>
    %43 = vector.shape_cast %40 : vector<8x128xf32> to vector<1x1x8x128xf32>
    tpu.vector_store %arg4[%c0_16, %c0_17, %c0_18, %c0_19], %43 {strides = array<i32>} : memref<1x3x8x128xf32, #tpu.memory_space<vmem>>, vector<1x1x8x128xf32>,
    %c0_20 = arith.constant 0 : index
    %c1 = arith.constant 1 : index
    %c0_21 = arith.constant 0 : index
    %c0_22 = arith.constant 0 : index
    %44 = vector.load %arg4[%c0_20, %c1, %c0_21, %c0_22] : memref<1x3x8x128xf32, #tpu.memory_space<vmem>>, vector<1x1x8x128xf32>
    %45 = vector.shape_cast %44 : vector<1x1x8x128xf32> to vector<8x128xf32>
    %46 = arith.addf %45, %34 : vector<8x128xf32>
    %c0_23 = arith.constant 0 : index
    %c1_24 = arith.constant 1 : index
    %c0_25 = arith.constant 0 : index
    %c0_26 = arith.constant 0 : index
    %47 = vector.load %arg4[%c0_23, %c1_24, %c0_25, %c0_26] : memref<1x3x8x128xf32, #tpu.memory_space<vmem>>, vector<1x1x8x128xf32>
    %48 = vector.shape_cast %47 : vector<1x1x8x128xf32> to vector<8x128xf32>
    %49 = vector.shape_cast %46 : vector<8x128xf32> to vector<1x1x8x128xf32>
    tpu.vector_store %arg4[%c0_23, %c1_24, %c0_25, %c0_26], %49 {strides = array<i32>} : memref<1x3x8x128xf32, #tpu.memory_space<vmem>>, vector<1x1x8x128xf32>,
    %c0_27 = arith.constant 0 : index
    %c2 = arith.constant 2 : index
    %c0_28 = arith.constant 0 : index
    %c0_29 = arith.constant 0 : index
    %50 = vector.load %arg4[%c0_27, %c2, %c0_28, %c0_29] : memref<1x3x8x128xf32, #tpu.memory_space<vmem>>, vector<1x1x8x128xf32>
    %51 = vector.shape_cast %50 : vector<1x1x8x128xf32> to vector<8x128xf32>
    %52 = arith.addf %51, %37 : vector<8x128xf32>
    %c0_30 = arith.constant 0 : index
    %c2_31 = arith.constant 2 : index
    %c0_32 = arith.constant 0 : index
    %c0_33 = arith.constant 0 : index
    %53 = vector.load %arg4[%c0_30, %c2_31, %c0_32, %c0_33] : memref<1x3x8x128xf32, #tpu.memory_space<vmem>>, vector<1x1x8x128xf32>
    %54 = vector.shape_cast %53 : vector<1x1x8x128xf32> to vector<8x128xf32>
    %55 = vector.shape_cast %52 : vector<8x128xf32> to vector<1x1x8x128xf32>
    tpu.vector_store %arg4[%c0_30, %c2_31, %c0_32, %c0_33], %55 {strides = array<i32>} : memref<1x3x8x128xf32, #tpu.memory_space<vmem>>, vector<1x1x8x128xf32>,
    return
  }
  func.func @transform_0(%arg0: i32, %arg1: i32) -> (i32, i32) {
    %c1_i32 = arith.constant 1 : i32
    %0 = arith.muli %arg0, %c1_i32 : i32
    %1 = arith.addi %0, %arg1 : i32
    %c0_i32 = arith.constant 0 : i32
    %c0_i32_0 = arith.constant 0 : i32
    return %1, %c0_i32 : i32, i32
  }
  func.func @transform_1(%arg0: i32, %arg1: i32) -> (i32, i32) {
    %c1_i32 = arith.constant 1 : i32
    %0 = arith.muli %arg0, %c1_i32 : i32
    %1 = arith.addi %0, %arg1 : i32
    %c0_i32 = arith.constant 0 : i32
    %c0_i32_0 = arith.constant 0 : i32
    return %1, %c0_i32 : i32, i32
  }
  func.func @transform_2(%arg0: i32, %arg1: i32) -> (i32, i32, i32, i32) {
    %c0_i32 = arith.constant 0 : i32
    %c0_i32_0 = arith.constant 0 : i32
    %c0_i32_1 = arith.constant 0 : i32
    %c0_i32_2 = arith.constant 0 : i32
    return %arg0, %c0_i32, %c0_i32_0, %c0_i32_1 : i32, i32, i32, i32
  }
}

</mosaic_0001>

<llo_original>
// kernel: tpu_custom_call.1
$region0: #{tpu_custom_call.1}
  #allocation0 [shape = 'u32[]', space=smem, size = 0x4, offset = 0x4, fixed_abs, tag = 'smem constant byte address 0x4 - core index']
  #allocation1 [shape = 'u32[144,128]{1,0:T(1,128)}', space=vmem, size = 0x12000, scoped, tag = 'internal scratch']
  %s0 = inlined_call_operand.hbm [shape: f32[16,128], index: 0, kind: input, shape index: {}]
  %s1 = inlined_call_operand.hbm [shape: f32[16,128], index: 1, kind: input, shape index: {}]
  %s2 = inlined_call_operand.hbm [shape: f32[1,3,8,128], index: 2, kind: output, shape index: {}]
  %s3 = sld [smem:[#allocation0]]
  $region30: #{tpu_custom_call.1} parent=0
    _
  %s5 = ssub.s32 1, %s3
  %s6 = scalar_select 0, %s5, %s3
  $region1: #{tpu_custom_call.1} parent=0
    #allocation2 [shape = 'u8[8192]{0}', space=vmem, size = 0x2000, scoped, tag = 'input window, operand 0, single buffered']
    #allocation3 [shape = 's32[1]{0}', space=sflag, size = 0x4, scoped, tag = 'scoped memory for tpu_custom_call.1']
    #allocation4 [shape = 's32[1]{0}', space=sflag, size = 0x4, scoped, tag = 'scoped memory for tpu_custom_call.1']
    #allocation5 [shape = 'u8[8192]{0}', space=vmem, size = 0x2000, scoped, tag = 'input window, operand 1, single buffered']
    #allocation6 [shape = 's32[1]{0}', space=sflag, size = 0x4, scoped, tag = 'scoped memory for tpu_custom_call.1']
    #allocation7 [shape = 'u8[12288]{0}', space=vmem, size = 0x3000, scoped, tag = 'output window, operand 0, single buffered']
    %7 = vsyncpa [#allocation3], 0
    %8 = vsyncpa [#allocation6], 0
    %9 = vsyncpa [#allocation4], 0
    // Predicated region
    $region2: #{tpu_custom_call.1} parent=1 // pred_check
      _
    $region3: #{tpu_custom_call.1} parent=1 // pred_check_branch
      %11 = sbr.rel (0) target = $region5
    $region4: #{tpu_custom_call.1} parent=1 // pred_region
      %s12 = sadd.s32 0, 0
      %s13 = smul.u32 2, %s12
      %s15 = ssub.s32 256, 256
      %16 = vsyncadd [#allocation3], %s15
      %s17 = smul.addr %s13, 128
      %s18 = scalar_lea.hbm %s0, %s17
      %s19 = sshll.u32 [#allocation2], 4
      %s20 = int_to_ptr.vmem [resolvable:$true] %s19
      %25 = dma.hbm_to_vmem [thread:$0]  %s18, 256, %s20, [#allocation3], 128, 128, 8
    $region5: #{tpu_custom_call.1} parent=1 // pred_fallthru
      _
    // Predicated region
    $region6: #{tpu_custom_call.1} parent=1 // pred_check
      _
    $region7: #{tpu_custom_call.1} parent=1 // pred_check_branch
      %27 = sbr.rel (0) target = $region9
    $region8: #{tpu_custom_call.1} parent=1 // pred_region
      %s28 = sadd.s32 0, 0
      %s29 = smul.u32 2, %s28
      %s31 = ssub.s32 256, 256
      %32 = vsyncadd [#allocation6], %s31
      %s33 = smul.addr %s29, 128
      %s34 = scalar_lea.hbm %s1, %s33
      %s35 = sshll.u32 [#allocation5], 4
      %s36 = int_to_ptr.vmem [resolvable:$true] %s35
      %41 = dma.hbm_to_vmem [thread:$0]  %s34, 256, %s36, [#allocation6], 128, 128, 8
    $region9: #{tpu_custom_call.1} parent=1 // pred_fallthru
      _
    // Predicated region
    $region10: #{tpu_custom_call.1} parent=1 // pred_check
      _
    $region11: #{tpu_custom_call.1} parent=1 // pred_check_branch
      %43 = sbr.rel (0) target = $region13
    $region12: #{tpu_custom_call.1} parent=1 // pred_region
      %44 = dma.done [#allocation3], 256
    $region13: #{tpu_custom_call.1} parent=1 // pred_fallthru
      _
    // Predicated region
    $region14: #{tpu_custom_call.1} parent=1 // pred_check
      _
    $region15: #{tpu_custom_call.1} parent=1 // pred_check_branch
      %46 = sbr.rel (0) target = $region17
    $region16: #{tpu_custom_call.1} parent=1 // pred_region
      %47 = dma.done [#allocation6], 256
    $region17: #{tpu_custom_call.1} parent=1 // pred_fallthru
      _
    %s48 = sadd.s32 0, 0
    %s49 = smul.u32 2, %s48
    %s50 = sadd.s32 0, 0
    %s51 = smul.u32 2, %s50
    %p52 = scmp.eq.s32.totalorder 0, 0
    // Predicated region
    $region18: #{tpu_custom_call.1} parent=1 // pred_check
      %p53 = pneg %p52
    $region19: #{tpu_custom_call.1} parent=1 // pred_check_branch
      %55 = sbr.rel (%p53) target = $region21
    $region20: #{tpu_custom_call.1} parent=1 // pred_region
      %56 = vst [vmem:[#allocation7] sm:$0xff] 0.0
      %57 = vst [vmem:[#allocation7 + $0x8] sm:$0xff] 0.0
      %58 = vst [vmem:[#allocation7 + $0x10] sm:$0xff] 0.0
    $region21: #{tpu_custom_call.1} parent=1 // pred_fallthru
      _
    %v59 = vld [vmem:[#allocation2] sm:$0xff]
    %v60 = vld [vmem:[#allocation5] sm:$0xff]
    %v61 = vmul.f32 %v59, %v60
    %v62 = vadd.f32 %v61, 0.0
    %v63 = vadd.f32 %v62, 0.0
    %v64 = vmul.f32 %v59, %v59
    %v65 = vadd.f32 %v64, 0.0
    %v66 = vadd.f32 %v65, 0.0
    %v67 = vmul.f32 %v60, %v60
    %v68 = vadd.f32 %v67, 0.0
    %v69 = vadd.f32 %v68, 0.0
    %s70 = scalar_lea.vmem [#allocation2], 8
    %v71 = vld [vmem:[%s70] sm:$0xff]
    %s72 = scalar_lea.vmem [#allocation5], 8
    %v73 = vld [vmem:[%s72] sm:$0xff]
    %v74 = vmul.f32 %v71, %v73
    %v75 = vadd.f32 %v74, 0.0
    %v76 = vadd.f32 %v63, %v75
    %v77 = vmul.f32 %v71, %v71
    %v78 = vadd.f32 %v77, 0.0
    %v79 = vadd.f32 %v66, %v78
    %v80 = vmul.f32 %v73, %v73
    %v81 = vadd.f32 %v80, 0.0
    %v82 = vadd.f32 %v69, %v81
    %v83 = vld [vmem:[#allocation7] sm:$0xff]
    %v84 = vadd.f32 %v83, %v76
    %85 = vst [vmem:[#allocation7] sm:$0xff] %v84
    %s86 = scalar_lea.vmem [#allocation7], 8
    %v87 = vld [vmem:[%s86] sm:$0xff]
    %v88 = vadd.f32 %v87, %v79
    %89 = vst [vmem:[%s86] sm:$0xff] %v88
    %s90 = scalar_lea.vmem [#allocation7], 16
    %v91 = vld [vmem:[%s90] sm:$0xff]
    %v92 = vadd.f32 %v91, %v82
    %93 = vst [vmem:[%s90] sm:$0xff] %v92
    // Predicated region
    $region22: #{tpu_custom_call.1} parent=1 // pred_check
      _
    $region23: #{tpu_custom_call.1} parent=1 // pred_check_branch
      %95 = sbr.rel (0) target = $region25
    $region24: #{tpu_custom_call.1} parent=1 // pred_region
      %s97 = ssub.s32 384, 384
      %98 = vsyncadd [#allocation4], %s97
      %s99 = sshll.u32 [#allocation7], 4
      %s100 = int_to_ptr.vmem [resolvable:$true] %s99
      %105 = dma.vmem_to_hbm [thread:$0]  %s100, 384, %s2, [#allocation4], 128, 128, 8
    $region25: #{tpu_custom_call.1} parent=1 // pred_fallthru
      _
    // Predicated region
    $region26: #{tpu_custom_call.1} parent=1 // pred_check
      _
    $region27: #{tpu_custom_call.1} parent=1 // pred_check_branch
      %107 = sbr.rel (0) target = $region29
    $region28: #{tpu_custom_call.1} parent=1 // pred_region
      %108 = dma.done [#allocation4], 384
    $region29: #{tpu_custom_call.1} parent=1 // pred_fallthru
      _
    %109 = vsyncpa [#allocation3], 1
    %110 = vsyncpa [#allocation6], 1
    %111 = vsyncpa [#allocation4], 1

</llo_original>
